<compile_context>
chip_gen: v5e
topology: v5e:2x2
jax: 0.10.0
libtpu: 0.0.40
codegen_flags: <defaults>
</compile_context>

<pallas_src>
import functools

import jax
import jax.numpy as jnp
from jax import lax
from jax.experimental import pallas as pl
from jax.experimental.pallas import tpu as pltpu


def _pc_loss_kernel(x_ref, o_ref, *, half, tile_rows, exp_dtype):
    """One grid step: softmax + L2(row diff) partial sum for one matched
    (tile_rows, C) slab of the left (x_ref[0]) and right (x_ref[1]) halves."""
    i = pl.program_id(0)

    # Mask for real (non-padded-tail) rows of this block.
    row_ids = i * tile_rows + lax.broadcasted_iota(jnp.int32, (tile_rows, 1), 0)
    row_mask = row_ids < half

    xl = x_ref[0].astype(jnp.float32)            # (tile_rows, C)
    xr = x_ref[1].astype(jnp.float32)
    # Zero padded tail rows *before* the softmax so garbage padding can't
    # produce Inf/NaN (softmax of zeros is uniform and is masked out below).
    xl = jnp.where(row_mask, xl, 0.0)
    xr = jnp.where(row_mask, xr, 0.0)

    def _softmax(x):
        m = jnp.max(x, axis=-1, keepdims=True)
        # exp is the binding EUP op on v7x / bf16-v6e; optionally run it in
        # bf16 (exp_dtype) there.  Reductions / reciprocal stay in f32.
        e = jnp.exp((x - m).astype(exp_dtype)).astype(jnp.float32)
        return e * pl.reciprocal(jnp.sum(e, axis=-1, keepdims=True), approx=False)

    d = _softmax(xl) - _softmax(xr)              # abs() is a no-op under L2
    per_row = jnp.sqrt(jnp.sum(d * d, axis=-1, keepdims=True))   # (tile_rows, 1)
    per_row = jnp.where(row_mask, per_row, 0.0)

    o_ref[0, 0] = jnp.sum(per_row)


def _vmem_capacity_bytes():
    try:
        return int(pltpu.get_tpu_info().vmem_capacity_bytes)
    except Exception:
        return 64 * 1024 * 1024      # conservative (v7x per-TC physical VMEM)


def _round_up(x, m):
    return ((x + m - 1) // m) * m


def _pick_tile_rows(half, c, in_itemsize, vmem_budget_bytes):
    # Native sublane pack: bf16 packs two rows per sublane -> align to 16.
    align = 16 if in_itemsize < 4 else 8

    # VMEM bytes per tile row:
    #   fused (2, rows, C) input block, double-buffered: 2 * 2 * C * itemsize
    # + ~4 f32 (rows, C) intermediates per half (cast, exp, softmax, diff)
    #   that the compiler keeps live as scratch:        2 * 4 * C * 4
    bytes_per_row = 2 * 2 * c * in_itemsize + 2 * 4 * c * 4
    max_rows_vmem = max(1, vmem_budget_bytes // bytes_per_row)

    # Byte-targeted tile: ~4 MiB of raw input per grid step keeps the
    # ~0.35us per-step overhead negligible without over-allocating VMEM.
    target_rows = max(1, (4 * 1024 * 1024) // (2 * c * in_itemsize))

    tr = min(max_rows_vmem, target_rows)

    # Guarantee >= 2 grid steps whenever the half can be split on an aligned
    # boundary, so both v7x TensorCores get work ("parallel" grid axis).
    if half >= 2 * align:
        tr = min(tr, _round_up(-(-half // 2), align))

    if tr >= half:
        return half                  # single full-extent block (always legal)
    return max(align, (tr // align) * align)


def pc_loss(features, *, tile_rows=None, use_bf16_exp=False):
    """features: (B, C), B even. Returns scalar float32 loss.

    Feed bf16 (or fp8) features where the producer allows it: on v5e / f32
    v6e this kernel is HBM-bound and halving the bytes read is a near-2x win.
    Set use_bf16_exp=True on v7x / bf16-v6e when ~1e-3 relative tolerance is
    acceptable (EUP bf16 exp path).
    """
    B, C = features.shape
    if B % 2 != 0:
        raise Exception("Incorrect batch size provided")
    half = B // 2

    cap = _vmem_capacity_bytes()
    if tile_rows is None:
        tile_rows = _pick_tile_rows(half, C, features.dtype.itemsize, int(cap * 0.35))
    tile_rows = min(int(tile_rows), half)
    nblocks = pl.cdiv(half, tile_rows)

    # Free (contiguous row-major) reshape; no HBM copy.  One fused stream
    # gives matched, pre-aligned left/right row tiles per grid step.
    halves = features.reshape(2, half, C)

    kernel = functools.partial(
        _pc_loss_kernel, half=half, tile_rows=tile_rows,
        exp_dtype=jnp.bfloat16 if use_bf16_exp else jnp.float32)

    partials = pl.pallas_call(
        kernel,
        out_shape=jax.ShapeDtypeStruct((nblocks, 1), jnp.float32),
        grid=(nblocks,),
        in_specs=[
            pl.BlockSpec((2, tile_rows, C), lambda i: (0, i, 0)),  # both halves
        ],
        out_specs=pl.BlockSpec((1, 1), lambda i: (i, 0), memory_space=pltpu.SMEM),
        compiler_params=pltpu.CompilerParams(
            dimension_semantics=("parallel",),
            vmem_limit_bytes=min(int(cap * 0.75), 128 * 1024 * 1024),
        ),
    )(halves)

    # Final tiny reduction over num_blocks partial sums in plain JAX.
    return jnp.sum(partials) / B


def pc_loss_ref(features):
    """Pure-JAX reference for verification."""
    p = jax.nn.softmax(features.astype(jnp.float32), axis=1)
    B = features.shape[0]
    left, right = p[: B // 2], p[B // 2:]
    return jnp.sum(jnp.linalg.norm(jnp.abs(left - right), ord=2, axis=1)) / B


if __name__ == "__main__":
    key = jax.random.PRNGKey(0)
    k1, k2, k3, k4, k5 = jax.random.split(key, 5)

    # Test 1: small f32 case (single full-extent block per half).
    f1 = jax.random.normal(k1, (8, 32), dtype=jnp.float32)
    out1 = jax.block_until_ready(pc_loss(f1))
    ref1 = jax.block_until_ready(pc_loss_ref(f1))
    assert jnp.allclose(out1, ref1, atol=1e-5, rtol=1e-5), (out1, ref1)

    # Test 2: forced small row-tile with a partial tail block (masking path).
    f2 = jax.random.normal(k2, (40, 128), dtype=jnp.float32)   # half=20, tile=8 -> tail of 4
    out2 = jax.block_until_ready(pc_loss(f2, tile_rows=8))
    ref2 = jax.block_until_ready(pc_loss_ref(f2))
    assert jnp.allclose(out2, ref2, atol=1e-5, rtol=1e-5), (out2, ref2)

    # Test 3: bf16 input kept in bf16 in HBM, f32 math inside the kernel.
    f3 = jax.random.normal(k3, (16, 256), dtype=jnp.bfloat16)
    out3 = jax.block_until_ready(pc_loss(f3, tile_rows=8))
    ref3 = jax.block_until_ready(pc_loss_ref(f3))
    assert jnp.allclose(out3, ref3, atol=1e-4, rtol=1e-4), (out3, ref3)

    # Test 4: auto tiling splits the half into >=2 parallel grid steps.
    f4 = jax.random.normal(k4, (64, 128), dtype=jnp.float32)   # half=32 -> 2 x 16-row blocks
    out4 = jax.block_until_ready(pc_loss(f4))
    ref4 = jax.block_until_ready(pc_loss_ref(f4))
    assert jnp.allclose(out4, ref4, atol=1e-5, rtol=1e-5), (out4, ref4)

    # Test 5: bf16 input with the bf16 EUP exp path (looser tolerance).
    f5 = jax.random.normal(k5, (64, 256), dtype=jnp.bfloat16)
    out5 = jax.block_until_ready(pc_loss(f5, use_bf16_exp=True))
    ref5 = jax.block_until_ready(pc_loss_ref(f5))
    assert jnp.allclose(out5, ref5, atol=2e-2, rtol=2e-2), (out5, ref5)

    print("KERNEL_OK")
</pallas_src>

<mosaic_0001>
module attributes {stable_mosaic.version = 11 : i64} {
  func.func @_pc_loss_kernel(%arg0: i32, %arg1: memref<2x4x32xf32, #tpu.memory_space<vmem>>, %arg2: memref<1x1xf32, #tpu.memory_space<smem>>) attributes {dimension_semantics = [#tpu.dimension_semantics<parallel>], iteration_bounds = array<i64: 1>, scalar_prefetch = 0 : i64, scratch_operands = 0 : i64, tpu.core_type = #tpu.core_type<tc>, window_params = [{transform_indices = @transform_0, window_bounds = array<i64: 2, 4, 32>}, {transform_indices = @transform_1, window_bounds = array<i64: 1, 1>}]} {
    %c4_i32 = arith.constant 4 : i32
    %0 = arith.muli %arg0, %c4_i32 : i32
    %1 = tpu.iota {dimensions = array<i32: 0>} : vector<4x1xi32>
    %2 = vector.broadcast %0 : i32 to vector<4x1xi32>
    %3 = arith.addi %2, %1 : vector<4x1xi32>
    %c4_i32_0 = arith.constant 4 : i32
    %4 = vector.broadcast %c4_i32_0 : i32 to vector<4x1xi32>
    %5 = arith.cmpi slt, %3, %4 : vector<4x1xi32>
    %c0 = arith.constant 0 : index
    %c0_1 = arith.constant 0 : index
    %c0_2 = arith.constant 0 : index
    %6 = vector.load %arg1[%c0, %c0_1, %c0_2] : memref<2x4x32xf32, #tpu.memory_space<vmem>>, vector<1x4x32xf32>
    %7 = vector.shape_cast %6 : vector<1x4x32xf32> to vector<4x32xf32>
    %c1 = arith.constant 1 : index
    %c0_3 = arith.constant 0 : index
    %c0_4 = arith.constant 0 : index
    %8 = vector.load %arg1[%c1, %c0_3, %c0_4] : memref<2x4x32xf32, #tpu.memory_space<vmem>>, vector<1x4x32xf32>
    %9 = vector.shape_cast %8 : vector<1x4x32xf32> to vector<4x32xf32>
    %cst = arith.constant 0.000000e+00 : f32
    %10 = vector.shape_cast %5 : vector<4x1xi1> to vector<4x1xi1>
    %11 = vector.broadcast %10 : vector<4x1xi1> to vector<4x32xi1>
    %12 = vector.broadcast %cst : f32 to vector<4x32xf32>
    %13 = arith.select %11, %7, %12 : vector<4x32xi1>, vector<4x32xf32>
    %cst_5 = arith.constant 0.000000e+00 : f32
    %14 = vector.shape_cast %5 : vector<4x1xi1> to vector<4x1xi1>
    %15 = vector.broadcast %14 : vector<4x1xi1> to vector<4x32xi1>
    %16 = vector.broadcast %cst_5 : f32 to vector<4x32xf32>
    %17 = arith.select %15, %9, %16 : vector<4x32xi1>, vector<4x32xf32>
    %cst_6 = arith.constant dense<0xFF800000> : vector<4xf32>
    %18 = vector.multi_reduction <maximumf>, %13, %cst_6 [1] : vector<4x32xf32> to vector<4xf32>
    %19 = vector.shape_cast %18 : vector<4xf32> to vector<4x1xf32>
    %20 = vector.broadcast %19 : vector<4x1xf32> to vector<4x32xf32>
    %21 = arith.subf %13, %20 : vector<4x32xf32>
    %22 = math.exp %21 : vector<4x32xf32>
    %cst_7 = arith.constant dense<0.000000e+00> : vector<4xf32>
    %23 = vector.multi_reduction <add>, %22, %cst_7 [1] : vector<4x32xf32> to vector<4xf32>
    %24 = vector.shape_cast %23 : vector<4xf32> to vector<4x1xf32>
    %25 = tpu.reciprocal %24 : vector<4x1xf32> -> vector<4x1xf32>
    %26 = vector.broadcast %25 : vector<4x1xf32> to vector<4x32xf32>
    %27 = arith.mulf %22, %26 : vector<4x32xf32>
    %cst_8 = arith.constant dense<0xFF800000> : vector<4xf32>
    %28 = vector.multi_reduction <maximumf>, %17, %cst_8 [1] : vector<4x32xf32> to vector<4xf32>
    %29 = vector.shape_cast %28 : vector<4xf32> to vector<4x1xf32>
    %30 = vector.broadcast %29 : vector<4x1xf32> to vector<4x32xf32>
    %31 = arith.subf %17, %30 : vector<4x32xf32>
    %32 = math.exp %31 : vector<4x32xf32>
    %cst_9 = arith.constant dense<0.000000e+00> : vector<4xf32>
    %33 = vector.multi_reduction <add>, %32, %cst_9 [1] : vector<4x32xf32> to vector<4xf32>
    %34 = vector.shape_cast %33 : vector<4xf32> to vector<4x1xf32>
    %35 = tpu.reciprocal %34 : vector<4x1xf32> -> vector<4x1xf32>
    %36 = vector.broadcast %35 : vector<4x1xf32> to vector<4x32xf32>
    %37 = arith.mulf %32, %36 : vector<4x32xf32>
    %38 = arith.subf %27, %37 : vector<4x32xf32>
    %39 = arith.mulf %38, %38 : vector<4x32xf32>
    %cst_10 = arith.constant dense<0.000000e+00> : vector<4xf32>
    %40 = vector.multi_reduction <add>, %39, %cst_10 [1] : vector<4x32xf32> to vector<4xf32>
    %41 = vector.shape_cast %40 : vector<4xf32> to vector<4x1xf32>
    %42 = math.sqrt %41 : vector<4x1xf32>
    %cst_11 = arith.constant 0.000000e+00 : f32
    %43 = vector.broadcast %cst_11 : f32 to vector<4x1xf32>
    %44 = arith.select %5, %42, %43 : vector<4x1xi1>, vector<4x1xf32>
    %45 = vector.shape_cast %44 : vector<4x1xf32> to vector<1x4x1xf32>
    %cst_12 = arith.constant dense<0.000000e+00> : vector<1xf32>
    %46 = vector.multi_reduction <add>, %45, %cst_12 [1, 2] : vector<1x4x1xf32> to vector<1xf32>
    %47 = vector.shape_cast %46 : vector<1xf32> to vector<1x1x1xf32>
    %48 = vector.extract %47[0, 0, 0] : f32 from vector<1x1x1xf32>
    %c0_13 = arith.constant 0 : index
    %c0_14 = arith.constant 0 : index
    %49 = memref.load %arg2[%c0_13, %c0_14] : memref<1x1xf32, #tpu.memory_space<smem>>
    memref.store %48, %arg2[%c0_13, %c0_14] : memref<1x1xf32, #tpu.memory_space<smem>>
    return
  }
  func.func @transform_0(%arg0: i32) -> (i32, i32, i32) {
    %c0_i32 = arith.constant 0 : i32
    %c0_i32_0 = arith.constant 0 : i32
    %c0_i32_1 = arith.constant 0 : i32
    return %c0_i32, %arg0, %c0_i32_0 : i32, i32, i32
  }
  func.func @transform_1(%arg0: i32) -> (i32, i32) {
    %c0_i32 = arith.constant 0 : i32
    %c0_i32_0 = arith.constant 0 : i32
    return %arg0, %c0_i32 : i32, i32
  }
}

</mosaic_0001>

<llo_original>
// kernel: tpu_custom_call.1
$region0: #{tpu_custom_call.1}
  #allocation0 [shape = 'u32[]', space=smem, size = 0x4, offset = 0x4, fixed_abs, tag = 'smem constant byte address 0x4 - core index']
  #allocation1 [shape = 'u32[72,128]{1,0:T(1,128)}', space=vmem, size = 0x9000, scoped, tag = 'internal scratch']
  %s0 = inlined_call_operand.hbm [shape: f32[2,4,32], index: 0, kind: input, shape index: {}]
  %s1 = inlined_call_operand.hbm [shape: f32[1,1], index: 1, kind: output, shape index: {}]
  %s2 = sld [smem:[#allocation0]]
  $region18: #{tpu_custom_call.1} parent=0
    _
  %s4 = ssub.s32 1, %s2
  %s5 = scalar_select 0, %s4, %s2
  $region1: #{tpu_custom_call.1} parent=0
    #allocation2 [shape = 'u8[4096]{0}', space=vmem, size = 0x1000, scoped, tag = 'input window, operand 0, single buffered']
    #allocation3 [shape = 's32[1]{0}', space=sflag, size = 0x4, scoped, tag = 'scoped memory for tpu_custom_call.1']
    #allocation4 [shape = 's32[1]{0}', space=sflag, size = 0x4, scoped, tag = 'scoped memory for tpu_custom_call.1']
    #allocation5 [shape = 'u8[512]{0}', space=smem, size = 0x200, scoped, tag = 'output window, operand 0, single buffered']
    %6 = vsyncpa [#allocation3], 0
    %7 = vsyncpa [#allocation4], 0
    // Predicated region
    $region2: #{tpu_custom_call.1} parent=1 // pred_check
      _
    $region3: #{tpu_custom_call.1} parent=1 // pred_check_branch
      %9 = sbr.rel (0) target = $region5
    $region4: #{tpu_custom_call.1} parent=1 // pred_region
      %11 = vsyncadd [#allocation3], 0
      %s12 = sshll.u32 %s0, 4
      %s13 = int_to_ptr.hbm [resolvable:$true] %s12
      %s14 = sshll.u32 [#allocation2], 4
      %s15 = int_to_ptr.vmem [resolvable:$true] %s14
      %20 = dma.hbm_to_vmem [thread:$0]  %s13, 128, %s15, [#allocation3], 64, 64, 4
    $region5: #{tpu_custom_call.1} parent=1 // pred_fallthru
      _
    // Predicated region
    $region6: #{tpu_custom_call.1} parent=1 // pred_check
      _
    $region7: #{tpu_custom_call.1} parent=1 // pred_check_branch
      %22 = sbr.rel (0) target = $region9
    $region8: #{tpu_custom_call.1} parent=1 // pred_region
      %24 = dma.done [#allocation3], 128
    $region9: #{tpu_custom_call.1} parent=1 // pred_fallthru
      _
    %s25 = smul.u32 0, 4
    %v26 = vlaneseq
    %v27 = vshrl.u32 %v26, 7
    %v28 = vstv %s25
    %v29 = vadd.s32 %v28, %v27
    %vm30 = vcmp.lt.s32.totalorder %v29, 4
    %v31 = vld [vmem:[#allocation2] sm:$0xf]
    %s32 = scalar_lea.vmem [#allocation2], 4
    %v33 = vld [vmem:[%s32] sm:$0xf]
    %v34 = vsel %vm30, 1, 0
    %vm35 = vcmp.eq.s32.totalorder %v34, 1
    %v36 = vsel %vm35, %v31, 0.0
    %v37 = vsel %vm35, %v33, 0.0
    %vm38 = vcmask 257024
    %v39 = vsel %vm38, %v36, -inf
    %40 = vmax.xlane.f32.xlu0 %v39
    %v41 = vpop.xlane.xlu0 %40
    %v42 = vsub.f32 %v36, %v41
    %v43 = vmul.f32 %v42, 1.442695
    %v44 = vpow.pop %v43
    %v45 = vsel %vm38, %v44, 0.0
    %46 = vadd.xlane.f32.xlu0 %v45
    %v47 = vpop.xlane.xlu0 %46
    %v48 = vrcp.pop %v47
    %v49 = vmul.f32 %v47, %v48
    %v50 = vsub.f32 1.0, %v49
    %v51 = vmul.f32 %v48, %v50
    %v52 = vadd.f32 %v48, %v51
    %vm53 = vweird.f32 %v47
    %vm54 = vweird.f32 %v48
    %vm55 = vmor %vm53, %vm54
    %v56 = vsel %vm55, %v48, %v52
    %v57 = vand.u32 2147483647, %v47
    %vm58 = vcmp.eq.f32.partialorder %v57, 8.507059e+37
    %v59 = vand.u32 %v47, 2147483648
    %v60 = vor.u32 1.1754944e-38, %v59
    %v61 = vsel %vm58, %v60, %v56
    %v62 = vmul.f32 %v44, %v61
    %v63 = vsel %vm38, %v37, -inf
    %64 = vmax.xlane.f32.xlu0 %v63
    %v65 = vpop.xlane.xlu0 %64
    %v66 = vsub.f32 %v37, %v65
    %v67 = vmul.f32 %v66, 1.442695
    %v68 = vpow.pop %v67
    %v69 = vsel %vm38, %v68, 0.0
    %70 = vadd.xlane.f32.xlu0 %v69
    %v71 = vpop.xlane.xlu0 %70
    %v72 = vrcp.pop %v71
    %v73 = vmul.f32 %v71, %v72
    %v74 = vsub.f32 1.0, %v73
    %v75 = vmul.f32 %v72, %v74
    %v76 = vadd.f32 %v72, %v75
    %vm77 = vweird.f32 %v71
    %vm78 = vweird.f32 %v72
    %vm79 = vmor %vm77, %vm78
    %v80 = vsel %vm79, %v72, %v76
    %v81 = vand.u32 2147483647, %v71
    %vm82 = vcmp.eq.f32.partialorder %v81, 8.507059e+37
    %v83 = vand.u32 %v71, 2147483648
    %v84 = vor.u32 1.1754944e-38, %v83
    %v85 = vsel %vm82, %v84, %v80
    %v86 = vmul.f32 %v68, %v85
    %v87 = vsub.f32 %v62, %v86
    %v88 = vmul.f32 %v87, %v87
    %v89 = vsel %vm38, %v88, 0.0
    %90 = vadd.xlane.f32.xlu0 %v89
    %v91 = vpop.xlane.xlu0 %90
    %v92 = vrsqrt.pop %v91
    %v93 = vmul.f32 %v92, %v91
    %v94 = vmul.f32 %v93, %v92
    %v95 = vmul.f32 0.5, %v94
    %v96 = vsub.f32 1.5, %v95
    %v97 = vmul.f32 %v92, %v96
    %v98 = vmul.f32 %v91, %v97
    %vm99 = vcmp.eq.f32.partialorder %v91, inf
    %v100 = vsel %vm99, %v91, %v98
    %vm101 = vcmp.eq.f32.partialorder %v91, 0.0
    %v102 = vand.u32 %v91, 2147483648
    %v103 = vsel %vm101, %v102, %v100
    %v104 = vsel %vm30, %v103, 0.0
    %vm105 = vcmask 3072
    %v106 = vsel %vm105, %v104, 0.0
    %107 = vadd.xlane.f32.xlu0 %v106
    %v108 = vpop.xlane.xlu0 %107
    %v109 = vrot.slane %v108, 4
    %v110 = vadd.f32 %v108, %v109
    %v111 = vrot.slane %v110, 2
    %v112 = vadd.f32 %v110, %v111
    %v113 = vrot.slane %v112, 1
    %v114 = vadd.f32 %v112, %v113
    %s115 = vtos %v114
    %s116 = scalar_lea.smem [#allocation5], 0
    %117 = sst [smem:[%s116]] %s115
    // Predicated region
    $region10: #{tpu_custom_call.1} parent=1 // pred_check
      _
    $region11: #{tpu_custom_call.1} parent=1 // pred_check_branch
      %119 = sbr.rel (0) target = $region13
    $region12: #{tpu_custom_call.1} parent=1 // pred_region
      %121 = vsyncadd [#allocation4], 0
      %s123 = sshll.u32 %s1, 4
      %s124 = int_to_ptr.hbm [resolvable:$true] %s123
      %126 = dma.smem_to_hbm [#allocation5], 16, %s124, [#allocation4]
    $region13: #{tpu_custom_call.1} parent=1 // pred_fallthru
      _
    // Predicated region
    $region14: #{tpu_custom_call.1} parent=1 // pred_check
      _
    $region15: #{tpu_custom_call.1} parent=1 // pred_check_branch
      %128 = sbr.rel (0) target = $region17
    $region16: #{tpu_custom_call.1} parent=1 // pred_region
      %130 = dma.done [#allocation4], 16
    $region17: #{tpu_custom_call.1} parent=1 // pred_fallthru
      _
    %131 = sfence
    %132 = vsyncpa [#allocation3], 1
    %133 = vsyncpa [#allocation4], 1

</llo_original>
